<compile_context>
chip_gen: v5e
topology: v5e:2x2
jax: 0.10.0
libtpu: 0.0.40
codegen_flags: <defaults>
</compile_context>

<pallas_src>
import jax
import jax.numpy as jnp
from jax.experimental import pallas as pl
from jax.experimental.pallas import tpu as pltpu

# ----- module hyper-parameters (len(X_INPUTS)=8, len(X_INPUTS_T)=8 assumed) -----
N_X_INPUTS = 8
INPUT_DIM = 8                                                     # len(X_INPUTS_T)
HIDDEN_LAYERS = (N_X_INPUTS * 2, N_X_INPUTS * 4, N_X_INPUTS * 2)  # (16, 32, 16)
OUTPUT_DIM = 1
BN_EPS = 1e-5

H0, H1, H2 = HIDDEN_LAYERS

_LANE = 128   # vreg lane width; the batch dimension lives on lanes in this kernel.

# Packed TRANSPOSED hidden-layer weights (rows = output features, stacked).
# Row starts 0, 16, 48 are multiples of 16 -> aligned for f32 (8,128) AND
# bf16 (16,128) native sublane tiling (no relayouts, per perf review).
_W0_R0, _W0_R1 = 0, H0
_W1_R0, _W1_R1 = H0, H0 + H1
_W2_R0, _W2_R1 = H0 + H1, H0 + H1 + H2
_WPACK_ROWS = H0 + H1 + H2            # 64
_WPACK_COLS = max(INPUT_DIM, H0, H1)  # 32

# All small f32 constants packed as COLUMNS (feature-major) in one tiny block.
_BPACK_ROWS = max(H0, H1, H2)         # 32
_BPACK_COLS = 8
_COL_B0, _COL_B1, _COL_B2, _COL_W3, _COL_B3 = 0, 1, 2, 3, 4


def _round_up(n, m):
    return ((n + m - 1) // m) * m


def _num_tensorcores_per_chip():
    """2 on v7x (megacore grid sharding pays off), 1 on v5e/v6e, 1 on failure."""
    try:
        kind = jax.devices()[0].device_kind.lower()
    except Exception:
        return 1
    return 2 if "7" in kind else 1


def _choose_tiling(B, max_tile_b, n_cores):
    """Lane-granular (128) batch tiles; split only when >1 TensorCore exists."""
    max_tile_b = max(_LANE, (int(max_tile_b) // _LANE) * _LANE)
    b_al = _round_up(max(B, 1), _LANE)
    if n_cores > 1 and b_al >= n_cores * _LANE:
        per_core = _round_up(pl.cdiv(b_al, n_cores), _LANE)
        tile_b = min(per_core, max_tile_b)
        # Keep n_steps a multiple of n_cores so no core idles on a tail step.
        n_steps = _round_up(pl.cdiv(b_al, tile_b), n_cores)
    else:
        # Single TensorCore: the grid is a serial loop -> one big tile if it fits.
        tile_b = min(b_al, max_tile_b)
        n_steps = pl.cdiv(b_al, tile_b)
    return tile_b, n_steps, n_steps * tile_b


def _net_kernel(xT_ref, wp_ref, bp_ref, o_ref):
    """Fused feature-major MLP forward for one lane-dense batch tile.

    xT_ref: (INPUT_DIM, TB) compute dtype  (batch on lanes -> dense loads)
    o_ref : (1, 1, TB)      f32            (batch on lanes -> dense stores)
    """
    xT = xT_ref[...]
    cd = xT.dtype

    # Static slices of the packed operands (sublane starts 0/16/48, lane start 0).
    w0T = wp_ref[_W0_R0:_W0_R1, 0:INPUT_DIM]      # (H0, IN)
    w1T = wp_ref[_W1_R0:_W1_R1, 0:H0]             # (H1, H0)
    w2T = wp_ref[_W2_R0:_W2_R1, 0:H1]             # (H2, H1)

    b0 = bp_ref[0:H0, _COL_B0:_COL_B0 + 1]        # (H0, 1) f32, lane-broadcast
    b1 = bp_ref[0:H1, _COL_B1:_COL_B1 + 1]        # (H1, 1)
    b2 = bp_ref[0:H2, _COL_B2:_COL_B2 + 1]        # (H2, 1)
    w3f = bp_ref[0:H2, _COL_W3:_COL_W3 + 1]       # (H2, 1)  BN-folded head weights
    b3 = bp_ref[0:1, _COL_B3:_COL_B3 + 1]         # (1, 1)   BN-folded head bias

    h = jnp.dot(w0T, xT, preferred_element_type=jnp.float32) + b0
    h = jnp.maximum(h, 0.0)                                         # ReLU (f32, VPU)

    h = jnp.dot(w1T, h.astype(cd), preferred_element_type=jnp.float32) + b1
    h = jnp.maximum(h, 0.0)

    h = jnp.dot(w2T, h.astype(cd), preferred_element_type=jnp.float32) + b2
    h = jnp.maximum(h, 0.0)

    # BatchNorm1d (eval) already folded into w3f/b3; Dropout(0.5) eval = identity.
    # Final (H2 -> 1) head: VPU multiply + sublane reduce -> lane-dense (1, TB) row.
    out_row = jnp.sum(h * w3f, axis=0, keepdims=True) + b3
    o_ref[...] = out_row[None]


def net_forward(x, params, *, max_tile_b=16384, compute_dtype=jnp.bfloat16):
    """x: (B, INPUT_DIM) f32.  Returns (B, OUTPUT_DIM) f32."""
    B, d_in = x.shape
    assert d_in == INPUT_DIM

    (w0, b0, w1, b1, w2, b2, gamma, beta, r_mean, r_var, w3, b3) = params

    # ---- Fold BatchNorm running stats + affine into the final Linear (glue). ----
    inv_std = 1.0 / jnp.sqrt(r_var + BN_EPS)
    scale = gamma * inv_std                             # (H2,)
    shift = beta - r_mean * scale                       # (H2,)
    w3f = w3.reshape(-1) * scale                        # (H2,)  folded head weights
    b3f = shift @ w3 + b3.reshape(-1)                   # (1,)   folded head bias

    # ---- Pack TRANSPOSED hidden-layer weights (compute dtype, 16-row aligned). ----
    wpack = jnp.zeros((_WPACK_ROWS, _WPACK_COLS), compute_dtype)
    wpack = wpack.at[_W0_R0:_W0_R1, 0:INPUT_DIM].set(w0.T.astype(compute_dtype))
    wpack = wpack.at[_W1_R0:_W1_R1, 0:H0].set(w1.T.astype(compute_dtype))
    wpack = wpack.at[_W2_R0:_W2_R1, 0:H1].set(w2.T.astype(compute_dtype))

    # ---- Pack all small f32 constants as columns of ONE tiny block. ----
    bpack = jnp.zeros((_BPACK_ROWS, _BPACK_COLS), jnp.float32)
    bpack = bpack.at[0:H0, _COL_B0].set(b0.reshape(-1))
    bpack = bpack.at[0:H1, _COL_B1].set(b1.reshape(-1))
    bpack = bpack.at[0:H2, _COL_B2].set(b2.reshape(-1))
    bpack = bpack.at[0:H2, _COL_W3].set(w3f)
    bpack = bpack.at[0, _COL_B3].set(b3f[0])

    # ---- Generation-aware batch tiling (split only on 2-TC chips, even steps). ----
    n_cores = _num_tensorcores_per_chip()
    tile_b, n_steps, b_pad = _choose_tiling(B, max_tile_b, n_cores)

    # ONE fused wrapper pass over x: transpose to feature-major (batch on lanes),
    # cast to the compute dtype and pad the lane dim to the grid size.  XLA fuses
    # transpose + convert + pad into a single read of x and a single write of xT.
    xT = jnp.pad(x.T.astype(compute_dtype), ((0, 0), (0, b_pad - B)))

    out = pl.pallas_call(
        _net_kernel,
        out_shape=jax.ShapeDtypeStruct((n_steps, 1, tile_b), jnp.float32),
        grid_spec=pltpu.PrefetchScalarGridSpec(
            num_scalar_prefetch=0,
            grid=(n_steps,),
            in_specs=[
                pl.BlockSpec((INPUT_DIM, tile_b), lambda i: (0, i)),   # x^T tile
                pl.BlockSpec(wpack.shape, lambda i: (0, 0)),           # packed weights
                pl.BlockSpec(bpack.shape, lambda i: (0, 0)),           # packed constants
            ],
            out_specs=pl.BlockSpec((1, 1, tile_b), lambda i: (i, 0, 0)),
        ),
        compiler_params=pltpu.CompilerParams(
            dimension_semantics=("parallel",),
            vmem_limit_bytes=32 * 1024 * 1024),        # headroom vs v5e's 16 MiB default
    )(xT, wpack, bpack)

    return out.reshape(-1)[:B].reshape(B, OUTPUT_DIM)


def init_params(key):
    """Deterministic synthetic parameters; linear weights stored as (in, out).

    NOTE: real PyTorch state_dicts store Linear weights as (out, in) and must be
    transposed before use here.
    """
    h0, h1, h2 = HIDDEN_LAYERS
    ks = jax.random.split(key, 8)

    def lin(k, fan_in, fan_out):
        kw, kb = jax.random.split(k)
        bound = 1.0 / jnp.sqrt(fan_in)
        w = jax.random.uniform(kw, (fan_in, fan_out), jnp.float32, -bound, bound)
        b = jax.random.uniform(kb, (1, fan_out), jnp.float32, -bound, bound)
        return w, b

    w0, b0 = lin(ks[0], INPUT_DIM, h0)
    w1, b1 = lin(ks[1], h0, h1)
    w2, b2 = lin(ks[2], h1, h2)
    w3, b3 = lin(ks[3], h2, OUTPUT_DIM)

    # Non-trivial BatchNorm stats/affine so the BN fold is actually exercised.
    gamma = jax.random.uniform(ks[4], (h2,), jnp.float32, 0.5, 1.5)
    beta = 0.1 * jax.random.normal(ks[5], (h2,), jnp.float32)
    r_mean = 0.1 * jax.random.normal(ks[6], (h2,), jnp.float32)
    r_var = jax.random.uniform(ks[7], (h2,), jnp.float32, 0.5, 1.5)

    return (w0, b0, w1, b1, w2, b2, gamma, beta, r_mean, r_var, w3, b3)


def net_forward_ref(x, params, compute_dtype=jnp.float32):
    """Pure-JAX reference, mirroring the kernel's matmul-input dtype."""
    (w0, b0, w1, b1, w2, b2, gamma, beta, r_mean, r_var, w3, b3) = params

    def mm(a, w):
        return jnp.dot(a.astype(compute_dtype), w.astype(compute_dtype),
                       preferred_element_type=jnp.float32)

    h = jnp.maximum(mm(x, w0) + b0, 0.0)
    h = jnp.maximum(mm(h, w1) + b1, 0.0)
    h = jnp.maximum(mm(h, w2) + b2, 0.0)
    scale = gamma / jnp.sqrt(r_var + BN_EPS)
    shift = beta - r_mean * scale
    h = h * scale + shift                  # BatchNorm1d (eval); Dropout eval = identity
    return h @ w3 + b3


if __name__ == "__main__":
    key = jax.random.PRNGKey(0)
    k_param, k_x = jax.random.split(key)

    B = 300            # not a multiple of 128 -> exercises lane padding + tail handling
    x = jax.random.normal(k_x, (B, INPUT_DIM), jnp.float32)
    params = init_params(k_param)

    # Default bf16 data path (HBM-bandwidth optimized).
    out_bf16 = jax.block_until_ready(net_forward(x, params))
    ref_bf16 = net_forward_ref(x, params, compute_dtype=jnp.bfloat16)
    assert out_bf16.shape == (B, OUTPUT_DIM)
    assert jnp.allclose(out_bf16, ref_bf16, atol=2e-3, rtol=2e-3), "bf16 mismatch"

    # Pure f32 path for a strict numerical check of the fused kernel.
    out_f32 = jax.block_until_ready(
        net_forward(x, params, compute_dtype=jnp.float32))
    ref_f32 = net_forward_ref(x, params, compute_dtype=jnp.float32)
    assert jnp.allclose(out_f32, ref_f32, atol=1e-4, rtol=1e-4), "f32 mismatch"

    print("KERNEL_OK")
</pallas_src>

<mosaic_0001>
module attributes {stable_mosaic.version = 11 : i64} {
  func.func @_net_kernel(%arg0: i32, %arg1: memref<8x384xbf16, #tpu.memory_space<vmem>>, %arg2: memref<64x32xbf16, #tpu.memory_space<vmem>>, %arg3: memref<32x8xf32, #tpu.memory_space<vmem>>, %arg4: memref<1x1x384xf32, #tpu.memory_space<vmem>>) attributes {dimension_semantics = [#tpu.dimension_semantics<parallel>], iteration_bounds = array<i64: 1>, scalar_prefetch = 0 : i64, scratch_operands = 0 : i64, tpu.core_type = #tpu.core_type<tc>, window_params = [{transform_indices = @transform_0, window_bounds = array<i64: 8, 384>}, {pipeline_mode = #tpu.pipeline_mode<synchronous>, transform_indices = @transform_1, window_bounds = array<i64: 64, 32>}, {pipeline_mode = #tpu.pipeline_mode<synchronous>, transform_indices = @transform_2, window_bounds = array<i64: 32, 8>}, {transform_indices = @transform_3, window_bounds = array<i64: 1, 1, 384>}]} {
    %c0 = arith.constant 0 : index
    %c0_0 = arith.constant 0 : index
    %0 = vector.load %arg1[%c0, %c0_0] : memref<8x384xbf16, #tpu.memory_space<vmem>>, vector<8x384xbf16>
    %c0_1 = arith.constant 0 : index
    %c0_2 = arith.constant 0 : index
    %1 = vector.load %arg2[%c0_1, %c0_2] : memref<64x32xbf16, #tpu.memory_space<vmem>>, vector<16x8xbf16>
    %c16 = arith.constant 16 : index
    %c0_3 = arith.constant 0 : index
    %2 = vector.load %arg2[%c16, %c0_3] : memref<64x32xbf16, #tpu.memory_space<vmem>>, vector<32x16xbf16>
    %c48 = arith.constant 48 : index
    %c0_4 = arith.constant 0 : index
    %3 = vector.load %arg2[%c48, %c0_4] : memref<64x32xbf16, #tpu.memory_space<vmem>>, vector<16x32xbf16>
    %c0_5 = arith.constant 0 : index
    %c0_6 = arith.constant 0 : index
    %4 = vector.load %arg3[%c0_5, %c0_6] : memref<32x8xf32, #tpu.memory_space<vmem>>, vector<16x1xf32>
    %c0_7 = arith.constant 0 : index
    %c1 = arith.constant 1 : index
    %5 = vector.load %arg3[%c0_7, %c1] : memref<32x8xf32, #tpu.memory_space<vmem>>, vector<32x1xf32>
    %c0_8 = arith.constant 0 : index
    %c2 = arith.constant 2 : index
    %6 = vector.load %arg3[%c0_8, %c2] : memref<32x8xf32, #tpu.memory_space<vmem>>, vector<16x1xf32>
    %c0_9 = arith.constant 0 : index
    %c3 = arith.constant 3 : index
    %7 = vector.load %arg3[%c0_9, %c3] : memref<32x8xf32, #tpu.memory_space<vmem>>, vector<16x1xf32>
    %c0_10 = arith.constant 0 : index
    %c4 = arith.constant 4 : index
    %8 = vector.load %arg3[%c0_10, %c4] : memref<32x8xf32, #tpu.memory_space<vmem>>, vector<1x1xf32>
    %cst = arith.constant dense<0.000000e+00> : vector<16x384xf32>
    %9 = tpu.matmul %1, %0, %cst {dimension_numbers = #tpu.dot_dimension_numbers<[1], [0], [0], [1], [0, 0, 1, 1], [], []>} : vector<16x8xbf16>, vector<8x384xbf16>, vector<16x384xf32> -> vector<16x384xf32>
    %10 = vector.broadcast %4 : vector<16x1xf32> to vector<16x384xf32>
    %11 = arith.addf %9, %10 : vector<16x384xf32>
    %cst_11 = arith.constant 0.000000e+00 : f32
    %12 = vector.broadcast %cst_11 : f32 to vector<16x384xf32>
    %13 = arith.maximumf %11, %12 : vector<16x384xf32>
    %14 = arith.truncf %13 : vector<16x384xf32> to vector<16x384xbf16>
    %cst_12 = arith.constant dense<0.000000e+00> : vector<32x384xf32>
    %15 = tpu.matmul %2, %14, %cst_12 {dimension_numbers = #tpu.dot_dimension_numbers<[1], [0], [0], [1], [0, 0, 1, 1], [], []>} : vector<32x16xbf16>, vector<16x384xbf16>, vector<32x384xf32> -> vector<32x384xf32>
    %16 = vector.broadcast %5 : vector<32x1xf32> to vector<32x384xf32>
    %17 = arith.addf %15, %16 : vector<32x384xf32>
    %cst_13 = arith.constant 0.000000e+00 : f32
    %18 = vector.broadcast %cst_13 : f32 to vector<32x384xf32>
    %19 = arith.maximumf %17, %18 : vector<32x384xf32>
    %20 = arith.truncf %19 : vector<32x384xf32> to vector<32x384xbf16>
    %cst_14 = arith.constant dense<0.000000e+00> : vector<16x384xf32>
    %21 = tpu.matmul %3, %20, %cst_14 {dimension_numbers = #tpu.dot_dimension_numbers<[1], [0], [0], [1], [0, 0, 1, 1], [], []>} : vector<16x32xbf16>, vector<32x384xbf16>, vector<16x384xf32> -> vector<16x384xf32>
    %22 = vector.broadcast %6 : vector<16x1xf32> to vector<16x384xf32>
    %23 = arith.addf %21, %22 : vector<16x384xf32>
    %cst_15 = arith.constant 0.000000e+00 : f32
    %24 = vector.broadcast %cst_15 : f32 to vector<16x384xf32>
    %25 = arith.maximumf %23, %24 : vector<16x384xf32>
    %26 = vector.broadcast %7 : vector<16x1xf32> to vector<16x384xf32>
    %27 = arith.mulf %25, %26 : vector<16x384xf32>
    %cst_16 = arith.constant dense<0.000000e+00> : vector<384xf32>
    %28 = vector.multi_reduction <add>, %27, %cst_16 [0] : vector<16x384xf32> to vector<384xf32>
    %29 = vector.shape_cast %28 : vector<384xf32> to vector<1x384xf32>
    %30 = vector.broadcast %8 : vector<1x1xf32> to vector<1x384xf32>
    %31 = arith.addf %29, %30 : vector<1x384xf32>
    %32 = vector.shape_cast %31 : vector<1x384xf32> to vector<1x1x384xf32>
    %c0_17 = arith.constant 0 : index
    %c0_18 = arith.constant 0 : index
    %c0_19 = arith.constant 0 : index
    %33 = vector.load %arg4[%c0_17, %c0_18, %c0_19] : memref<1x1x384xf32, #tpu.memory_space<vmem>>, vector<1x1x384xf32>
    tpu.vector_store %arg4[%c0_17, %c0_18, %c0_19], %32 {strides = array<i32>} : memref<1x1x384xf32, #tpu.memory_space<vmem>>, vector<1x1x384xf32>,
    return
  }
  func.func @transform_0(%arg0: i32) -> (i32, i32) {
    %c0_i32 = arith.constant 0 : i32
    %c0_i32_0 = arith.constant 0 : i32
    return %c0_i32, %arg0 : i32, i32
  }
  func.func @transform_1(%arg0: i32) -> (i32, i32) {
    %c0_i32 = arith.constant 0 : i32
    %c0_i32_0 = arith.constant 0 : i32
    %c0_i32_1 = arith.constant 0 : i32
    return %c0_i32, %c0_i32_0 : i32, i32
  }
  func.func @transform_2(%arg0: i32) -> (i32, i32) {
    %c0_i32 = arith.constant 0 : i32
    %c0_i32_0 = arith.constant 0 : i32
    %c0_i32_1 = arith.constant 0 : i32
    return %c0_i32, %c0_i32_0 : i32, i32
  }
  func.func @transform_3(%arg0: i32) -> (i32, i32, i32) {
    %c0_i32 = arith.constant 0 : i32
    %c0_i32_0 = arith.constant 0 : i32
    %c0_i32_1 = arith.constant 0 : i32
    return %arg0, %c0_i32, %c0_i32_0 : i32, i32, i32
  }
}

</mosaic_0001>

<llo_original>
// kernel: tpu_custom_call.1
$region0: #{tpu_custom_call.1}
  #allocation0 [shape = 'u32[]', space=smem, size = 0x4, offset = 0x4, fixed_abs, tag = 'smem constant byte address 0x4 - core index']
  #allocation1 [shape = 'u32[72,128]{1,0:T(1,128)}', space=vmem, size = 0x9000, scoped, tag = 'internal scratch']
  %s0 = inlined_call_operand.vmem [shape: bf16[8,384], index: 0, kind: input, shape index: {}]
  %s1 = inlined_call_operand.vmem [shape: bf16[64,32], index: 1, kind: input, shape index: {}]
  %s2 = inlined_call_operand.vmem [shape: f32[32,8], index: 2, kind: input, shape index: {}]
  %s3 = inlined_call_operand.hbm [shape: f32[1,1,384], index: 3, kind: output, shape index: {}]
  %s4 = sld [smem:[#allocation0]]
  $region22: #{tpu_custom_call.1} parent=0
    _
  %s6 = ssub.s32 1, %s4
  %s7 = scalar_select 0, %s6, %s4
  $region1: #{tpu_custom_call.1} parent=0
    #allocation2 [shape = 'u8[1536]{0}', space=vmem, size = 0x800, scoped, tag = 'output window, operand 0, single buffered']
    #allocation3 [shape = 's32[1]{0}', space=sflag, size = 0x4, scoped, tag = 'scoped memory for tpu_custom_call.1']
    %8 = vsyncpa [#allocation3], 0
    // Predicated region
    $region2: #{tpu_custom_call.1} parent=1 // pred_check
      _
    $region3: #{tpu_custom_call.1} parent=1 // pred_check_branch
      %10 = sbr.rel (0) target = $region5
    $region4: #{tpu_custom_call.1} parent=1 // pred_region
      _
    $region5: #{tpu_custom_call.1} parent=1 // pred_fallthru
      _
    // Predicated region
    $region6: #{tpu_custom_call.1} parent=1 // pred_check
      _
    $region7: #{tpu_custom_call.1} parent=1 // pred_check_branch
      %12 = sbr.rel (0) target = $region9
    $region8: #{tpu_custom_call.1} parent=1 // pred_region
      _
    $region9: #{tpu_custom_call.1} parent=1 // pred_fallthru
      _
    // Predicated region
    $region10: #{tpu_custom_call.1} parent=1 // pred_check
      _
    $region11: #{tpu_custom_call.1} parent=1 // pred_check_branch
      %14 = sbr.rel (0) target = $region13
    $region12: #{tpu_custom_call.1} parent=1 // pred_region
      _
    $region13: #{tpu_custom_call.1} parent=1 // pred_fallthru
      _
    %v16 = vld [vmem:[%s0] sm:$0xff]
    %v17 = vld [vmem:[%s0 + $0x8] sm:$0xf]
    %v18 = vld [vmem:[%s1] sm:$0xf]
    %v19 = vld [vmem:[%s1 + $0x4] sm:$0xf]
    %v20 = vld [vmem:[%s1 + $0x8] sm:$0xf]
    %v21 = vld [vmem:[%s1 + $0xc] sm:$0xf]
    %v22 = vld [vmem:[%s1 + $0x10] sm:$0xf]
    %v23 = vld [vmem:[%s1 + $0x14] sm:$0xf]
    %v24 = vld [vmem:[%s1 + $0x18] sm:$0xf]
    %v25 = vld [vmem:[%s1 + $0x1c] sm:$0xf]
    %v26 = vld [vmem:[%s2] sm:$0xff]
    %v27 = vld [vmem:[%s2 + $0x8] sm:$0xff]
    %v28 = vld [vmem:[%s2 + $0x10] sm:$0xff]
    %v29 = vld [vmem:[%s2 + $0x18] sm:$0xff]
    %v30 = vld [vmem:[%s2] sm:$0x1]
    %32 = vset.pattern.permute.xlu0 0
    %33 = vperm.xlu0 %32, %v26
    %v34 = vpop.permute.xlu0 %33
    %37 = vset.pattern.permute.xlu0 0
    %38 = vperm.xlu0 %37, %v27
    %v39 = vpop.permute.xlu0 %38
    %v43 = vunpack.c.l.b16 %v18
    %v44 = vunpack.c.l.b16 %v19
    %v45 = vpack.c.b16 %v44, %v43
    %v48 = vunpack.c.l.b16 %v16
    %v49 = vunpack.c.h.b16 %v16
    %v50 = vunpack.c.l.b16 %v17
    %v51 = vpack.c.b16 %v48, %v48
    %v52 = vpack.c.b16 %v49, %v49
    %v53 = vpack.c.b16 %v50, %v50
    %vm54 = vcmask 64512
    %v56 = vsel %vm54, %v45, 0
    %vm58 = vcmask 1043456
    %v60 = vsel %vm58, %v51, 0
    %v63 = vsel %vm58, %v52, 0
    %v66 = vsel %vm58, %v53, 0
    %68 = vmatpush.bf16.msra.mxu0 0
    %69 = vmatpush.bf16.msra.mxu0 0
    %70 = vmatpush.bf16.msra.mxu0 0
    %71 = vmatpush.bf16.msra.mxu0 0
    %72 = vmatpush.bf16.msra.mxu0 0
    %73 = vmatpush.bf16.msra.mxu0 0
    %74 = vmatpush.bf16.msra.mxu0 0
    %75 = vmatpush.bf16.msra.mxu0 %v60
    %76 = vmatmul.bf16.gmra.mxu0 %v56
    %v77 = vpop.f32.mrf.mxu0
    %v78 = vadd.f32 %v34, %v77
    %v79 = vpop.f32.mrf.mxu0
    %v80 = vadd.f32 %v39, %v79
    %81 = vdwg.mxu0
    %82 = vmatpush.bf16.msra.mxu0 0
    %83 = vmatpush.bf16.msra.mxu0 0
    %84 = vmatpush.bf16.msra.mxu0 0
    %85 = vmatpush.bf16.msra.mxu0 0
    %86 = vmatpush.bf16.msra.mxu0 0
    %87 = vmatpush.bf16.msra.mxu0 0
    %88 = vmatpush.bf16.msra.mxu0 0
    %89 = vmatpush.bf16.msra.mxu0 %v63
    %90 = vmatmul.bf16.gmra.mxu0 %v56
    %v91 = vpop.f32.mrf.mxu0
    %v92 = vadd.f32 %v34, %v91
    %v93 = vpop.f32.mrf.mxu0
    %v94 = vadd.f32 %v39, %v93
    %95 = vdwg.mxu0
    %96 = vmatpush.bf16.msra.mxu0 0
    %97 = vmatpush.bf16.msra.mxu0 0
    %98 = vmatpush.bf16.msra.mxu0 0
    %99 = vmatpush.bf16.msra.mxu0 0
    %100 = vmatpush.bf16.msra.mxu0 0
    %101 = vmatpush.bf16.msra.mxu0 0
    %102 = vmatpush.bf16.msra.mxu0 0
    %103 = vmatpush.bf16.msra.mxu0 %v66
    %104 = vmatmul.bf16.gmra.mxu0 %v56
    %v105 = vpop.f32.mrf.mxu0
    %v106 = vadd.f32 %v34, %v105
    %v107 = vpop.f32.mrf.mxu0
    %v108 = vadd.f32 %v39, %v107
    %109 = vdwg.mxu0
    %v110 = vmax.f32 %v78, 0.0
    %v111 = vmax.f32 %v92, 0.0
    %v112 = vmax.f32 %v106, 0.0
    %v113 = vmax.f32 %v80, 0.0
    %v114 = vmax.f32 %v94, 0.0
    %v115 = vmax.f32 %v108, 0.0
    %v116 = vpack.c.bf16 %v113, %v110
    %v117 = vpack.c.bf16 %v114, %v111
    %v118 = vpack.c.bf16 %v115, %v112
    %119 = vset.pattern.permute.xlu0 1
    %120 = vperm.xlu0 %119, %v26
    %v121 = vpop.permute.xlu0 %120
    %123 = vset.pattern.permute.xlu0 1
    %124 = vperm.xlu0 %123, %v27
    %v125 = vpop.permute.xlu0 %124
    %128 = vset.pattern.permute.xlu0 1
    %129 = vperm.xlu0 %128, %v28
    %v130 = vpop.permute.xlu0 %129
    %133 = vset.pattern.permute.xlu0 1
    %134 = vperm.xlu0 %133, %v29
    %v135 = vpop.permute.xlu0 %134
    %v141 = vunpack.c.l.b16 %v20
    %v142 = vunpack.c.l.b16 %v21
    %v143 = vunpack.c.l.b16 %v22
    %v144 = vunpack.c.l.b16 %v23
    %v145 = vpack.c.b16 %v142, %v141
    %v146 = vpack.c.b16 %v144, %v143
    %vm147 = vcmask 130048
    %v149 = vsel %vm147, %v145, 0
    %v152 = vsel %vm147, %v146, 0
    %154 = vmatpush.bf16.msra.mxu0 0
    %155 = vmatpush.bf16.msra.mxu0 0
    %156 = vmatpush.bf16.msra.mxu0 0
    %157 = vmatpush.bf16.msra.mxu0 0
    %158 = vmatpush.bf16.msra.mxu0 0
    %159 = vmatpush.bf16.msra.mxu0 0
    %160 = vmatpush.bf16.msra.mxu0 0
    %161 = vmatpush.bf16.msra.mxu0 %v116
    %162 = vmatmul.bf16.gmra.mxu0 %v149
    %v163 = vpop.f32.mrf.mxu0
    %v164 = vadd.f32 %v121, %v163
    %v165 = vpop.f32.mrf.mxu0
    %v166 = vadd.f32 %v125, %v165
    %167 = vmatmul.bf16.gmra.mxu0 %v152
    %v168 = vpop.f32.mrf.mxu0
    %v169 = vadd.f32 %v130, %v168
    %v170 = vpop.f32.mrf.mxu0
    %v171 = vadd.f32 %v135, %v170
    %172 = vdwg.mxu0
    %173 = vmatpush.bf16.msra.mxu0 0
    %174 = vmatpush.bf16.msra.mxu0 0
    %175 = vmatpush.bf16.msra.mxu0 0
    %176 = vmatpush.bf16.msra.mxu0 0
    %177 = vmatpush.bf16.msra.mxu0 0
    %178 = vmatpush.bf16.msra.mxu0 0
    %179 = vmatpush.bf16.msra.mxu0 0
    %180 = vmatpush.bf16.msra.mxu0 %v117
    %181 = vmatmul.bf16.gmra.mxu0 %v149
    %v182 = vpop.f32.mrf.mxu0
    %v183 = vadd.f32 %v121, %v182
    %v184 = vpop.f32.mrf.mxu0
    %v185 = vadd.f32 %v125, %v184
    %186 = vmatmul.bf16.gmra.mxu0 %v152
    %v187 = vpop.f32.mrf.mxu0
    %v188 = vadd.f32 %v130, %v187
    %v189 = vpop.f32.mrf.mxu0
    %v190 = vadd.f32 %v135, %v189
    %191 = vdwg.mxu0
    %192 = vmatpush.bf16.msra.mxu0 0
    %193 = vmatpush.bf16.msra.mxu0 0
    %194 = vmatpush.bf16.msra.mxu0 0
    %195 = vmatpush.bf16.msra.mxu0 0
    %196 = vmatpush.bf16.msra.mxu0 0
    %197 = vmatpush.bf16.msra.mxu0 0
    %198 = vmatpush.bf16.msra.mxu0 0
    %199 = vmatpush.bf16.msra.mxu0 %v118
    %200 = vmatmul.bf16.gmra.mxu0 %v149
    %v201 = vpop.f32.mrf.mxu0
    %v202 = vadd.f32 %v121, %v201
    %v203 = vpop.f32.mrf.mxu0
    %v204 = vadd.f32 %v125, %v203
    %205 = vmatmul.bf16.gmra.mxu0 %v152
    %v206 = vpop.f32.mrf.mxu0
    %v207 = vadd.f32 %v130, %v206
    %v208 = vpop.f32.mrf.mxu0
    %v209 = vadd.f32 %v135, %v208
    %210 = vdwg.mxu0
    %v211 = vmax.f32 %v164, 0.0
    %v212 = vmax.f32 %v183, 0.0
    %v213 = vmax.f32 %v202, 0.0
    %v214 = vmax.f32 %v166, 0.0
    %v215 = vmax.f32 %v185, 0.0
    %v216 = vmax.f32 %v204, 0.0
    %v217 = vmax.f32 %v169, 0.0
    %v218 = vmax.f32 %v188, 0.0
    %v219 = vmax.f32 %v207, 0.0
    %v220 = vmax.f32 %v171, 0.0
    %v221 = vmax.f32 %v190, 0.0
    %v222 = vmax.f32 %v209, 0.0
    %v223 = vpack.c.bf16 %v214, %v211
    %v224 = vpack.c.bf16 %v215, %v212
    %v225 = vpack.c.bf16 %v216, %v213
    %v226 = vpack.c.bf16 %v220, %v217
    %v227 = vpack.c.bf16 %v221, %v218
    %v228 = vpack.c.bf16 %v222, %v219
    %229 = vset.pattern.permute.xlu0 2
    %230 = vperm.xlu0 %229, %v26
    %v231 = vpop.permute.xlu0 %230
    %233 = vset.pattern.permute.xlu0 2
    %234 = vperm.xlu0 %233, %v27
    %v235 = vpop.permute.xlu0 %234
    %v239 = vunpack.c.l.b16 %v24
    %v240 = vunpack.c.l.b16 %v25
    %v241 = vpack.c.b16 %v240, %v239
    %vm242 = vcmask 261120
    %v244 = vsel %vm242, %v241, 0
    %246 = vmatpush.bf16.msra.mxu0 0
    %247 = vmatpush.bf16.msra.mxu0 0
    %248 = vmatpush.bf16.msra.mxu0 0
    %249 = vmatpush.bf16.msra.mxu0 0
    %250 = vmatpush.bf16.msra.mxu0 0
    %251 = vmatpush.bf16.msra.mxu0 0
    %252 = vmatpush.bf16.msra.mxu0 %v226
    %253 = vmatpush.bf16.msra.mxu0 %v223
    %254 = vmatmul.bf16.gmra.mxu0 %v244
    %v255 = vpop.f32.mrf.mxu0
    %v256 = vadd.f32 %v231, %v255
    %v257 = vpop.f32.mrf.mxu0
    %v258 = vadd.f32 %v235, %v257
    %259 = vdwg.mxu0
    %260 = vmatpush.bf16.msra.mxu0 0
    %261 = vmatpush.bf16.msra.mxu0 0
    %262 = vmatpush.bf16.msra.mxu0 0
    %263 = vmatpush.bf16.msra.mxu0 0
    %264 = vmatpush.bf16.msra.mxu0 0
    %265 = vmatpush.bf16.msra.mxu0 0
    %266 = vmatpush.bf16.msra.mxu0 %v227
    %267 = vmatpush.bf16.msra.mxu0 %v224
    %268 = vmatmul.bf16.gmra.mxu0 %v244
    %v269 = vpop.f32.mrf.mxu0
    %v270 = vadd.f32 %v231, %v269
    %v271 = vpop.f32.mrf.mxu0
    %v272 = vadd.f32 %v235, %v271
    %273 = vdwg.mxu0
    %274 = vmatpush.bf16.msra.mxu0 0
    %275 = vmatpush.bf16.msra.mxu0 0
    %276 = vmatpush.bf16.msra.mxu0 0
    %277 = vmatpush.bf16.msra.mxu0 0
    %278 = vmatpush.bf16.msra.mxu0 0
    %279 = vmatpush.bf16.msra.mxu0 0
    %280 = vmatpush.bf16.msra.mxu0 %v228
    %281 = vmatpush.bf16.msra.mxu0 %v225
    %282 = vmatmul.bf16.gmra.mxu0 %v244
    %v283 = vpop.f32.mrf.mxu0
    %v284 = vadd.f32 %v231, %v283
    %v285 = vpop.f32.mrf.mxu0
    %v286 = vadd.f32 %v235, %v285
    %287 = vdwg.mxu0
    %v288 = vmax.f32 %v256, 0.0
    %v289 = vmax.f32 %v270, 0.0
    %v290 = vmax.f32 %v284, 0.0
    %v291 = vmax.f32 %v258, 0.0
    %v292 = vmax.f32 %v272, 0.0
    %v293 = vmax.f32 %v286, 0.0
    %294 = vset.pattern.permute.xlu0 3
    %295 = vperm.xlu0 %294, %v26
    %v296 = vpop.permute.xlu0 %295
    %298 = vset.pattern.permute.xlu0 3
    %299 = vperm.xlu0 %298, %v27
    %v300 = vpop.permute.xlu0 %299
    %v302 = vmul.f32 %v288, %v296
    %v303 = vmul.f32 %v289, %v296
    %v304 = vmul.f32 %v290, %v296
    %v305 = vmul.f32 %v291, %v300
    %v306 = vmul.f32 %v292, %v300
    %v307 = vmul.f32 %v293, %v300
    %v308 = vadd.f32 %v302, %v305
    %v309 = vrot.slane %v308, 4
    %v310 = vadd.f32 %v308, %v309
    %v311 = vrot.slane %v310, 2
    %v312 = vadd.f32 %v310, %v311
    %v313 = vrot.slane %v312, 1
    %v314 = vadd.f32 %v312, %v313
    %v315 = vadd.f32 %v303, %v306
    %v316 = vrot.slane %v315, 4
    %v317 = vadd.f32 %v315, %v316
    %v318 = vrot.slane %v317, 2
    %v319 = vadd.f32 %v317, %v318
    %v320 = vrot.slane %v319, 1
    %v321 = vadd.f32 %v319, %v320
    %v322 = vadd.f32 %v304, %v307
    %v323 = vrot.slane %v322, 4
    %v324 = vadd.f32 %v322, %v323
    %v325 = vrot.slane %v324, 2
    %v326 = vadd.f32 %v324, %v325
    %v327 = vrot.slane %v326, 1
    %v328 = vadd.f32 %v326, %v327
    %330 = vset.pattern.permute.xlu0 4
    %331 = vperm.xlu0 %330, %v30
    %v332 = vpop.permute.xlu0 %331
    %v334 = vadd.f32 %v314, %v332
    %v335 = vadd.f32 %v321, %v332
    %v336 = vadd.f32 %v328, %v332
    %v340 = vrot.slane %v335, 7
    %v341 = vrot.slane %v336, 6
    %vm342 = vcmask 1040384
    %v343 = vsel %vm342, %v334, %v340
    %vm344 = vcmask 1041408
    %v345 = vsel %vm344, %v343, %v341
    %v347 = vlaneseq
    %vm348 = vcmp.ge.s32.totalorder %v347, 0
    %vm349 = vcmp.lt.s32.totalorder %v347, 384
    %vm350 = vmand %vm348, %vm349
    %351 = vst.msk [vmem:[#allocation2] sm:$0x7] %vm350, %v345
    // Predicated region
    $region14: #{tpu_custom_call.1} parent=1 // pred_check
      _
    $region15: #{tpu_custom_call.1} parent=1 // pred_check_branch
      %353 = sbr.rel (0) target = $region17
    $region16: #{tpu_custom_call.1} parent=1 // pred_region
      %355 = vsyncadd [#allocation3], 0
      %s357 = sshll.u32 [#allocation2], 4
      %s358 = int_to_ptr.vmem [resolvable:$true] %s357
      %s359 = sshll.u32 %s3, 4
      %s360 = int_to_ptr.hbm [resolvable:$true] %s359
      %362 = dma.vmem_to_hbm [thread:$0]  %s358, 48, %s360, [#allocation3]
    $region17: #{tpu_custom_call.1} parent=1 // pred_fallthru
      _
    // Predicated region
    $region18: #{tpu_custom_call.1} parent=1 // pred_check
      _
    $region19: #{tpu_custom_call.1} parent=1 // pred_check_branch
      %364 = sbr.rel (0) target = $region21
    $region20: #{tpu_custom_call.1} parent=1 // pred_region
      %366 = dma.done [#allocation3], 48
    $region21: #{tpu_custom_call.1} parent=1 // pred_fallthru
      _
    %367 = vsyncpa [#allocation3], 1

</llo_original>
